<compile_context>
chip_gen: v7x
topology: tpu7x:2x2x1
jax: 0.10.0
libtpu: 0.0.40
codegen_flags: <defaults>
</compile_context>

<pallas_src>
import functools
import math

import jax
import jax.numpy as jnp
import numpy as np
from jax.experimental import pallas as pl
from jax.experimental.pallas import tpu as pltpu


def _de_kernel(x1_ref, x2_ref, w1t_ref, w2t_ref, f1_ref, f2_ref, d_ref, *, inv_hw):
    f32 = jnp.float32

    x1 = x1_ref[...].astype(f32)                 # (Bn, C, HW)   lanes = HW (dense)
    x2 = x2_ref[...].astype(f32)                 # (Bn, C, HW)
    diff = x2 - x1                               # (Bn, C, HW)
    bn = x1.shape[0]

    # Global average / max pooling over the spatial (lane) axis -> (Bn, C).
    pooled_avg = jnp.sum(diff, axis=-1) * inv_hw
    pooled_max = jnp.max(diff, axis=-1)

    # Fused fc1 over both pooled vectors of every image in the block: one matmul
    # with a (2*Bn, C) LHS instead of 2*Bn separate 1-lane matvecs.
    pooled = jnp.concatenate([pooled_avg, pooled_max], axis=0)          # (2*Bn, C)
    h = jnp.maximum(
        jnp.dot(pooled, w1t_ref[...], preferred_element_type=f32), 0.0)  # (2*Bn, Cmid)

    # fc2 is linear & bias-free: fc2(h_avg) + fc2(h_max) == fc2(h_avg + h_max).
    h_sum = h[:bn] + h[bn:]                                              # (Bn, Cmid)
    a = jnp.dot(h_sum, w2t_ref[...], preferred_element_type=f32)         # (Bn, C)

    # scale = 1 + sigmoid(a); single materialized broadcast reused three times.
    scale = 1.0 + 1.0 / (1.0 + jnp.exp(-a))                              # (Bn, C)
    scale_b = jnp.broadcast_to(scale[:, :, None], x1.shape)              # (Bn, C, HW)

    f1_ref[...] = (x1 * scale_b).astype(f1_ref.dtype)
    f2_ref[...] = (x2 * scale_b).astype(f2_ref.dtype)
    # different == feature2 - feature1 == diff * (1 + att)  (ulp-level identical)
    d_ref[...] = (diff * scale_b).astype(d_ref.dtype)


def _pick_block_batch(N, per_img_bytes, vmem_budget_bytes):
    """Largest divisor of N fitting the VMEM budget, keeping grid length >= 2."""
    bn_cap = max(1, int(vmem_budget_bytes // max(1, per_img_bytes)))
    if N >= 2:
        # Keep >= 2 grid steps: lets v7x shard the parallel batch axis across its
        # two TensorCores and keeps the software pipeline non-degenerate.
        bn_cap = min(bn_cap, N // 2)
    bn_cap = max(1, min(bn_cap, N))
    for bn in range(bn_cap, 0, -1):
        if N % bn == 0:
            return bn
    return 1


def de_pallas(x1_nchw, x2_nchw, w1, w2, *, out_dtype=None,
              vmem_budget_bytes=48 << 20):
    """x1/x2: (N, C, H, W).  w1: (C//16, C), w2: (C, C//16).

    Returns (feature1, feature2, different), each (N, C, H, W) in `out_dtype`
    (defaults to the input dtype)."""
    N, C, H, W = x1_nchw.shape
    HW = H * W
    Cmid = w1.shape[0]
    assert w1.shape == (Cmid, C) and w2.shape == (C, Cmid)
    if out_dtype is None:
        out_dtype = x1_nchw.dtype

    # Free reshape (H, W contiguous) -> lane-dense minor dim of size H*W.
    x1 = x1_nchw.reshape(N, C, HW)
    x2 = x2_nchw.reshape(N, C, HW)
    # One-time wrapper-side transposes so the kernel uses weights as plain RHS.
    w1t = jnp.transpose(w1).astype(jnp.float32)          # (C, Cmid)
    w2t = jnp.transpose(w2).astype(jnp.float32)          # (Cmid, C)

    in_b = jnp.dtype(x1.dtype).itemsize
    out_b = jnp.dtype(out_dtype).itemsize
    # Double-buffered working set per image: 2 inputs + 3 outputs.
    per_img_bytes = 2 * (2 * in_b + 3 * out_b) * C * HW
    # TODO(synk): two-phase (strip pooling + spatially tiled scaling) path needed
    # once a single image no longer fits the per-step VMEM budget.
    assert per_img_bytes <= vmem_budget_bytes, (
        "single image exceeds VMEM budget; two-phase pooling path required")

    bn = _pick_block_batch(N, per_img_bytes, vmem_budget_bytes)
    grid_n = N // bn

    # Explicit scoped-VMEM limit: working set + weights (double-buffered) + slack,
    # clamped under v7x's 64 MiB physical ceiling.
    weight_bytes = 2 * 2 * (C * Cmid * 4)
    working_set = per_img_bytes * bn + weight_bytes
    vmem_limit = int(min(max(working_set + (4 << 20), 16 << 20), 56 << 20))

    img_spec = pl.BlockSpec((bn, C, HW), lambda n: (n, 0, 0))
    kernel = functools.partial(_de_kernel, inv_hw=1.0 / HW)

    f1, f2, d = pl.pallas_call(
        kernel,
        out_shape=tuple(jax.ShapeDtypeStruct((N, C, HW), out_dtype)
                        for _ in range(3)),
        grid_spec=pltpu.PrefetchScalarGridSpec(
            num_scalar_prefetch=0,
            grid=(grid_n,),
            in_specs=[
                img_spec,                                     # input1
                img_spec,                                     # input2
                pl.BlockSpec((C, Cmid), lambda n: (0, 0)),    # fc1 weight (pre-T)
                pl.BlockSpec((Cmid, C), lambda n: (0, 0)),    # fc2 weight (pre-T)
            ],
            out_specs=[img_spec, img_spec, img_spec],
        ),
        compiler_params=pltpu.CompilerParams(
            dimension_semantics=("parallel",),
            vmem_limit_bytes=vmem_limit),
    )(x1, x2, w1t, w2t)

    return (f1.reshape(N, C, H, W),
            f2.reshape(N, C, H, W),
            d.reshape(N, C, H, W))


# ---------------- deterministic parameter construction --------------------
def init_params(key, in_planes):
    cmid = in_planes // 16
    assert cmid >= 1, "in_planes must be >= 16 for the DE module"
    k1, k2 = jax.random.split(key)
    # PyTorch Conv2d default init: U(-b, b), b = 1/sqrt(fan_in * kh * kw).
    b1 = 1.0 / math.sqrt(in_planes)
    W1 = jax.random.uniform(k1, (cmid, in_planes), jnp.float32, -b1, b1)
    b2 = 1.0 / math.sqrt(cmid)
    W2 = jax.random.uniform(k2, (in_planes, cmid), jnp.float32, -b2, b2)
    return W1, W2


# ---------------- pure-JAX reference ---------------------------------------
def de_reference(x1, x2, W1, W2):
    diff = x2 - x1
    avg = jnp.mean(diff, axis=(2, 3))          # (N, C)
    mx = jnp.max(diff, axis=(2, 3))            # (N, C)

    def mlp(v):                                # v: (N, C)
        h = jnp.maximum(v @ W1.T, 0.0)         # (N, Cmid)
        return h @ W2.T                        # (N, C)

    a = mlp(avg) + mlp(mx)
    att = (1.0 / (1.0 + jnp.exp(-a)))[:, :, None, None]
    f1 = x1 * att + x1
    f2 = x2 * att + x2
    return f1, f2, f2 - f1


if __name__ == "__main__":
    N, C, H, W = 4, 32, 16, 16        # in_planes=32 -> fc hidden = 2
    key = jax.random.PRNGKey(0)
    kx1, kx2, kp = jax.random.split(key, 3)
    x1 = jax.random.normal(kx1, (N, C, H, W), jnp.float32)
    x2 = jax.random.normal(kx2, (N, C, H, W), jnp.float32)
    W1, W2 = init_params(kp, C)

    f1, f2, d = de_pallas(x1, x2, W1, W2)
    (f1, f2, d) = jax.block_until_ready((f1, f2, d))
    assert f1.shape == (N, C, H, W) and f2.shape == (N, C, H, W) and d.shape == (N, C, H, W)

    rf1, rf2, rd = de_reference(x1, x2, W1, W2)
    for got, ref in ((f1, rf1), (f2, rf2), (d, rd)):
        np.testing.assert_allclose(np.asarray(got), np.asarray(ref),
                                   rtol=1e-4, atol=1e-4)
    print("KERNEL_OK")
</pallas_src>

<mosaic_0001>
module attributes {stable_mosaic.version = 11 : i64} {
  func.func @_de_kernel(%arg0: i32, %arg1: memref<2x32x256xf32, #tpu.memory_space<vmem>>, %arg2: memref<2x32x256xf32, #tpu.memory_space<vmem>>, %arg3: memref<32x2xf32, #tpu.memory_space<vmem>>, %arg4: memref<2x32xf32, #tpu.memory_space<vmem>>, %arg5: memref<2x32x256xf32, #tpu.memory_space<vmem>>, %arg6: memref<2x32x256xf32, #tpu.memory_space<vmem>>, %arg7: memref<2x32x256xf32, #tpu.memory_space<vmem>>) attributes {dimension_semantics = [#tpu.dimension_semantics<parallel>], iteration_bounds = array<i64: 2>, scalar_prefetch = 0 : i64, scratch_operands = 0 : i64, tpu.core_type = #tpu.core_type<tc>, window_params = [{transform_indices = @transform_0, window_bounds = array<i64: 2, 32, 256>}, {transform_indices = @transform_1, window_bounds = array<i64: 2, 32, 256>}, {pipeline_mode = #tpu.pipeline_mode<synchronous>, transform_indices = @transform_2, window_bounds = array<i64: 32, 2>}, {pipeline_mode = #tpu.pipeline_mode<synchronous>, transform_indices = @transform_3, window_bounds = array<i64: 2, 32>}, {transform_indices = @transform_4, window_bounds = array<i64: 2, 32, 256>}, {transform_indices = @transform_5, window_bounds = array<i64: 2, 32, 256>}, {transform_indices = @transform_6, window_bounds = array<i64: 2, 32, 256>}]} {
    %c0 = arith.constant 0 : index
    %c0_0 = arith.constant 0 : index
    %c0_1 = arith.constant 0 : index
    %0 = vector.load %arg1[%c0, %c0_0, %c0_1] : memref<2x32x256xf32, #tpu.memory_space<vmem>>, vector<2x32x256xf32>
    %c0_2 = arith.constant 0 : index
    %c0_3 = arith.constant 0 : index
    %c0_4 = arith.constant 0 : index
    %1 = vector.load %arg2[%c0_2, %c0_3, %c0_4] : memref<2x32x256xf32, #tpu.memory_space<vmem>>, vector<2x32x256xf32>
    %2 = arith.subf %1, %0 : vector<2x32x256xf32>
    %cst = arith.constant dense<0.000000e+00> : vector<2x32xf32>
    %3 = vector.multi_reduction <add>, %2, %cst [2] : vector<2x32x256xf32> to vector<2x32xf32>
    %cst_5 = arith.constant 3.906250e-03 : f32
    %4 = vector.broadcast %cst_5 : f32 to vector<2x32xf32>
    %5 = arith.mulf %3, %4 : vector<2x32xf32>
    %cst_6 = arith.constant dense<0xFF800000> : vector<2x32xf32>
    %6 = vector.multi_reduction <maximumf>, %2, %cst_6 [2] : vector<2x32x256xf32> to vector<2x32xf32>
    %7 = tpu.concatenate %5, %6 in 0 : vector<2x32xf32>, vector<2x32xf32> -> vector<4x32xf32>
    %c0_7 = arith.constant 0 : index
    %c0_8 = arith.constant 0 : index
    %8 = vector.load %arg3[%c0_7, %c0_8] : memref<32x2xf32, #tpu.memory_space<vmem>>, vector<32x2xf32>
    %cst_9 = arith.constant dense<0.000000e+00> : vector<4x2xf32>
    %9 = tpu.matmul %7, %8, %cst_9 {dimension_numbers = #tpu.dot_dimension_numbers<[1], [0], [0], [1], [0, 0, 1, 1], [], []>} : vector<4x32xf32>, vector<32x2xf32>, vector<4x2xf32> -> vector<4x2xf32>
    %cst_10 = arith.constant 0.000000e+00 : f32
    %10 = vector.broadcast %cst_10 : f32 to vector<4x2xf32>
    %11 = arith.maximumf %9, %10 : vector<4x2xf32>
    %12 = vector.extract_strided_slice %11 {offsets = [0, 0], sizes = [2, 2], strides = [1, 1]} : vector<4x2xf32> to vector<2x2xf32>
    %13 = vector.extract_strided_slice %11 {offsets = [2, 0], sizes = [2, 2], strides = [1, 1]} : vector<4x2xf32> to vector<2x2xf32>
    %14 = arith.addf %12, %13 : vector<2x2xf32>
    %c0_11 = arith.constant 0 : index
    %c0_12 = arith.constant 0 : index
    %15 = vector.load %arg4[%c0_11, %c0_12] : memref<2x32xf32, #tpu.memory_space<vmem>>, vector<2x32xf32>
    %cst_13 = arith.constant dense<0.000000e+00> : vector<2x32xf32>
    %16 = tpu.matmul %14, %15, %cst_13 {dimension_numbers = #tpu.dot_dimension_numbers<[1], [0], [0], [1], [0, 0, 1, 1], [], []>} : vector<2x2xf32>, vector<2x32xf32>, vector<2x32xf32> -> vector<2x32xf32>
    %cst_14 = arith.constant 0.000000e+00 : f32
    %17 = vector.broadcast %cst_14 : f32 to vector<2x32xf32>
    %18 = arith.subf %17, %16 : vector<2x32xf32>
    %19 = math.exp %18 : vector<2x32xf32>
    %cst_15 = arith.constant 1.000000e+00 : f32
    %20 = vector.broadcast %cst_15 : f32 to vector<2x32xf32>
    %21 = arith.addf %20, %19 : vector<2x32xf32>
    %cst_16 = arith.constant 1.000000e+00 : f32
    %22 = vector.broadcast %cst_16 : f32 to vector<2x32xf32>
    %23 = arith.divf %22, %21 : vector<2x32xf32>
    %cst_17 = arith.constant 1.000000e+00 : f32
    %24 = vector.broadcast %cst_17 : f32 to vector<2x32xf32>
    %25 = arith.addf %24, %23 : vector<2x32xf32>
    %26 = vector.shape_cast %25 : vector<2x32xf32> to vector<2x32x1xf32>
    %27 = vector.shape_cast %26 : vector<2x32x1xf32> to vector<2x32x1xf32>
    %28 = vector.broadcast %27 : vector<2x32x1xf32> to vector<2x32x256xf32>
    %29 = arith.mulf %0, %28 : vector<2x32x256xf32>
    %c0_18 = arith.constant 0 : index
    %c0_19 = arith.constant 0 : index
    %c0_20 = arith.constant 0 : index
    %30 = vector.load %arg5[%c0_18, %c0_19, %c0_20] : memref<2x32x256xf32, #tpu.memory_space<vmem>>, vector<2x32x256xf32>
    tpu.vector_store %arg5[%c0_18, %c0_19, %c0_20], %29 {strides = array<i32>} : memref<2x32x256xf32, #tpu.memory_space<vmem>>, vector<2x32x256xf32>,
    %31 = arith.mulf %1, %28 : vector<2x32x256xf32>
    %c0_21 = arith.constant 0 : index
    %c0_22 = arith.constant 0 : index
    %c0_23 = arith.constant 0 : index
    %32 = vector.load %arg6[%c0_21, %c0_22, %c0_23] : memref<2x32x256xf32, #tpu.memory_space<vmem>>, vector<2x32x256xf32>
    tpu.vector_store %arg6[%c0_21, %c0_22, %c0_23], %31 {strides = array<i32>} : memref<2x32x256xf32, #tpu.memory_space<vmem>>, vector<2x32x256xf32>,
    %33 = arith.mulf %2, %28 : vector<2x32x256xf32>
    %c0_24 = arith.constant 0 : index
    %c0_25 = arith.constant 0 : index
    %c0_26 = arith.constant 0 : index
    %34 = vector.load %arg7[%c0_24, %c0_25, %c0_26] : memref<2x32x256xf32, #tpu.memory_space<vmem>>, vector<2x32x256xf32>
    tpu.vector_store %arg7[%c0_24, %c0_25, %c0_26], %33 {strides = array<i32>} : memref<2x32x256xf32, #tpu.memory_space<vmem>>, vector<2x32x256xf32>,
    return
  }
  func.func @transform_0(%arg0: i32) -> (i32, i32, i32) {
    %c0_i32 = arith.constant 0 : i32
    %c0_i32_0 = arith.constant 0 : i32
    %c0_i32_1 = arith.constant 0 : i32
    return %arg0, %c0_i32, %c0_i32_0 : i32, i32, i32
  }
  func.func @transform_1(%arg0: i32) -> (i32, i32, i32) {
    %c0_i32 = arith.constant 0 : i32
    %c0_i32_0 = arith.constant 0 : i32
    %c0_i32_1 = arith.constant 0 : i32
    return %arg0, %c0_i32, %c0_i32_0 : i32, i32, i32
  }
  func.func @transform_2(%arg0: i32) -> (i32, i32) {
    %c0_i32 = arith.constant 0 : i32
    %c0_i32_0 = arith.constant 0 : i32
    %c0_i32_1 = arith.constant 0 : i32
    return %c0_i32, %c0_i32_0 : i32, i32
  }
  func.func @transform_3(%arg0: i32) -> (i32, i32) {
    %c0_i32 = arith.constant 0 : i32
    %c0_i32_0 = arith.constant 0 : i32
    %c0_i32_1 = arith.constant 0 : i32
    return %c0_i32, %c0_i32_0 : i32, i32
  }
  func.func @transform_4(%arg0: i32) -> (i32, i32, i32) {
    %c0_i32 = arith.constant 0 : i32
    %c0_i32_0 = arith.constant 0 : i32
    %c0_i32_1 = arith.constant 0 : i32
    return %arg0, %c0_i32, %c0_i32_0 : i32, i32, i32
  }
  func.func @transform_5(%arg0: i32) -> (i32, i32, i32) {
    %c0_i32 = arith.constant 0 : i32
    %c0_i32_0 = arith.constant 0 : i32
    %c0_i32_1 = arith.constant 0 : i32
    return %arg0, %c0_i32, %c0_i32_0 : i32, i32, i32
  }
  func.func @transform_6(%arg0: i32) -> (i32, i32, i32) {
    %c0_i32 = arith.constant 0 : i32
    %c0_i32_0 = arith.constant 0 : i32
    %c0_i32_1 = arith.constant 0 : i32
    return %arg0, %c0_i32, %c0_i32_0 : i32, i32, i32
  }
}

</mosaic_0001>

<llo_original>
// kernel: tpu_custom_call.1
$region0: #{tpu_custom_call.1}
  #allocation0 [shape = 'u32[]', space=smem, size = 0x4, offset = 0x4, fixed_abs, tag = 'smem constant byte address 0x4 - core index']
  #allocation1 [shape = 'u32[144,128]{1,0:T(1,128)}', space=vmem, size = 0x12000, scoped, tag = 'internal scratch']
  %s0 = inlined_call_operand.hbm [shape: f32[4,32,256], index: 0, kind: input, shape index: {}]
  %s1 = inlined_call_operand.hbm [shape: f32[4,32,256], index: 1, kind: input, shape index: {}]
  %s2 = inlined_call_operand.vmem [shape: f32[32,2], index: 2, kind: input, shape index: {}]
  %s3 = inlined_call_operand.vmem [shape: f32[2,32], index: 3, kind: input, shape index: {}]
  %s4 = inlined_call_operand.hbm [shape: f32[4,32,256], index: 4, kind: output, shape index: {0}]
  %s5 = inlined_call_operand.hbm [shape: f32[4,32,256], index: 5, kind: output, shape index: {1}]
  %s6 = inlined_call_operand.hbm [shape: f32[4,32,256], index: 6, kind: output, shape index: {2}]
  %7 = xla_tuple %s4, %s5, %s6
  %s8 = sld [smem:[#allocation0]]
  $region73: #{tpu_custom_call.1} parent=0
    _
  %s10 = ssub.s32 1, %s8
  %s11 = scalar_select 0, %s10, %s8
  $region1: #{tpu_custom_call.1} parent=0
    #allocation2 [shape = 'u8[131072]{0}', space=vmem, size = 0x20000, scoped, tag = 'input window, operand 0']
    #allocation3 [shape = 's32[2]{0}', space=sflag, size = 0x8, scoped, tag = 'scoped memory for tpu_custom_call.1']
    #allocation4 [shape = 's32[2]{0}', space=sflag, size = 0x8, scoped, tag = 'scoped memory for tpu_custom_call.1']
    #allocation5 [shape = 'u8[131072]{0}', space=vmem, size = 0x20000, scoped, tag = 'input window, operand 1']
    #allocation6 [shape = 's32[2]{0}', space=sflag, size = 0x8, scoped, tag = 'scoped memory for tpu_custom_call.1']
    #allocation7 [shape = 'u8[131072]{0}', space=vmem, size = 0x20000, scoped, tag = 'output window, operand 0']
    #allocation8 [shape = 'u8[131072]{0}', space=vmem, size = 0x20000, scoped, tag = 'output window, operand 1']
    #allocation9 [shape = 's32[2]{0}', space=sflag, size = 0x8, scoped, tag = 'scoped memory for tpu_custom_call.1']
    #allocation10 [shape = 'u8[131072]{0}', space=vmem, size = 0x20000, scoped, tag = 'output window, operand 2']
    %12 = vsyncpa [#allocation3], 0
    %s13 = scalar_lea.sflag [#allocation3], 1
    %14 = vsyncpa %s13, 0
    %15 = vsyncpa [#allocation6], 0
    %s16 = scalar_lea.sflag [#allocation6], 1
    %17 = vsyncpa %s16, 0
    %18 = vsyncpa [#allocation4], 0
    %s19 = scalar_lea.sflag [#allocation4], 1
    %20 = vsyncpa %s19, 0
    %21 = vsyncpa [#allocation9], 0
    %s22 = scalar_lea.sflag [#allocation9], 1
    %23 = vsyncpa %s22, 0
    loop: start=0, step=1, limit=4
    $region2: #{tpu_custom_call.1} parent=1 // loop_pre_header
      _
    $region3: #{tpu_custom_call.1} parent=1 // loop_header
      %s25 = sphi 0, %s29
      %p26 = scmp.ge.s32.totalorder %s25, 4
      %s35 = sphi 0, %s37
      %s38 = sphi 0, %s35
      %s39 = sphi 0, %s38
      %s55 = sphi 0, %s39
      %s61 = sphi 0, %s63
      %s64 = sphi 0, %s61
      %s65 = sphi 0, %s64
      %s81 = sphi 0, %s65
      %s85 = sphi 0, %s85
      %s87 = sphi 0, %s85
      %s88 = sphi 0, %s87
      %s102 = sphi 0, %s88
      %s106 = sphi 0, %s106
      %s108 = sphi 0, %s106
      %s109 = sphi 0, %s108
      %s123 = sphi 0, %s109
      %s129 = sphi 0, %s131
      %s132 = sphi 0, %s129
      %s133 = sphi 0, %s132
      %s149 = sphi 0, %s133
      %s155 = sphi 0, %s157
      %s158 = sphi 0, %s155
      %s159 = sphi 0, %s158
      %s175 = sphi 0, %s159
      %s181 = sphi 0, %s183
      %s184 = sphi 0, %s181
      %s185 = sphi 0, %s184
      %s201 = sphi 0, %s185
    $region4: #{tpu_custom_call.1} parent=1 // loop_header_branch
      %28 = sbr.rel (%p26) target = $region8
    $region5: #{tpu_custom_call.1} parent=1 // loop_body
      %s30 = ssub.s32 %s25, 1
      %s31 = ssub.s32 %s25, 2
      %s32 = sadd.s32 %s25, 1
      %s33 = ssub.s32 %s25, %s32
      %p34 = scmp.eq.s32.totalorder %s33, 0
      %s36 = sadd.s32 %s35, 1
      %s37 = scalar_select %p34, %s35, %s36
      %p40 = pneg %p34
      %p41 = scmp.eq.s32.totalorder %s25, 1
      %p42 = por %p40, %p41
      %p43 = scmp.ne.s32.totalorder %s35, %s38
      %p44 = scmp.eq.s32.totalorder %s25, 0
      %p45 = por %p43, %p44
      %p46 = scmp.ne.s32.totalorder %s35, %s38
      %p47 = scmp.eq.s32.totalorder %s30, 1
      %p48 = por %p46, %p47
      %p49 = scmp.ne.s32.totalorder %s38, %s39
      %p50 = scmp.eq.s32.totalorder %s30, 0
      %p51 = por %p49, %p50
      %p52 = scmp.ne.s32.totalorder %s38, %s39
      %p53 = scmp.eq.s32.totalorder %s31, 1
      %p54 = por %p52, %p53
      %p56 = scmp.ne.s32.totalorder %s39, %s55
      %p57 = scmp.eq.s32.totalorder %s31, 0
      %p58 = por %p56, %p57
      %s59 = ssub.s32 %s25, %s32
      %p60 = scmp.eq.s32.totalorder %s59, 0
      %s62 = sadd.s32 %s61, 1
      %s63 = scalar_select %p60, %s61, %s62
      %p66 = pneg %p60
      %p67 = scmp.eq.s32.totalorder %s25, 1
      %p68 = por %p66, %p67
      %p69 = scmp.ne.s32.totalorder %s61, %s64
      %p70 = scmp.eq.s32.totalorder %s25, 0
      %p71 = por %p69, %p70
      %p72 = scmp.ne.s32.totalorder %s61, %s64
      %p73 = scmp.eq.s32.totalorder %s30, 1
      %p74 = por %p72, %p73
      %p75 = scmp.ne.s32.totalorder %s64, %s65
      %p76 = scmp.eq.s32.totalorder %s30, 0
      %p77 = por %p75, %p76
      %p78 = scmp.ne.s32.totalorder %s64, %s65
      %p79 = scmp.eq.s32.totalorder %s31, 1
      %p80 = por %p78, %p79
      %p82 = scmp.ne.s32.totalorder %s65, %s81
      %p83 = scmp.eq.s32.totalorder %s31, 0
      %p84 = por %p82, %p83
      %s86 = sadd.s32 %s85, 1
      %p89 = scmp.eq.s32.totalorder %s25, 1
      %p90 = scmp.ne.s32.totalorder %s85, %s87
      %p91 = scmp.eq.s32.totalorder %s25, 0
      %p92 = por %p90, %p91
      %p93 = scmp.ne.s32.totalorder %s85, %s87
      %p94 = scmp.eq.s32.totalorder %s30, 1
      %p95 = por %p93, %p94
      %p96 = scmp.ne.s32.totalorder %s87, %s88
      %p97 = scmp.eq.s32.totalorder %s30, 0
      %p98 = por %p96, %p97
      %p99 = scmp.ne.s32.totalorder %s87, %s88
      %p100 = scmp.eq.s32.totalorder %s31, 1
      %p101 = por %p99, %p100
      %p103 = scmp.ne.s32.totalorder %s88, %s102
      %p104 = scmp.eq.s32.totalorder %s31, 0
      %p105 = por %p103, %p104
      %s107 = sadd.s32 %s106, 1
      %p110 = scmp.eq.s32.totalorder %s25, 1
      %p111 = scmp.ne.s32.totalorder %s106, %s108
      %p112 = scmp.eq.s32.totalorder %s25, 0
      %p113 = por %p111, %p112
      %p114 = scmp.ne.s32.totalorder %s106, %s108
      %p115 = scmp.eq.s32.totalorder %s30, 1
      %p116 = por %p114, %p115
      %p117 = scmp.ne.s32.totalorder %s108, %s109
      %p118 = scmp.eq.s32.totalorder %s30, 0
      %p119 = por %p117, %p118
      %p120 = scmp.ne.s32.totalorder %s108, %s109
      %p121 = scmp.eq.s32.totalorder %s31, 1
      %p122 = por %p120, %p121
      %p124 = scmp.ne.s32.totalorder %s109, %s123
      %p125 = scmp.eq.s32.totalorder %s31, 0
      %p126 = por %p124, %p125
      %s127 = ssub.s32 %s25, %s32
      %p128 = scmp.eq.s32.totalorder %s127, 0
      %s130 = sadd.s32 %s129, 1
      %s131 = scalar_select %p128, %s129, %s130
      %p134 = pneg %p128
      %p135 = scmp.eq.s32.totalorder %s25, 1
      %p136 = por %p134, %p135
      %p137 = scmp.ne.s32.totalorder %s129, %s132
      %p138 = scmp.eq.s32.totalorder %s25, 0
      %p139 = por %p137, %p138
      %p140 = scmp.ne.s32.totalorder %s129, %s132
      %p141 = scmp.eq.s32.totalorder %s30, 1
      %p142 = por %p140, %p141
      %p143 = scmp.ne.s32.totalorder %s132, %s133
      %p144 = scmp.eq.s32.totalorder %s30, 0
      %p145 = por %p143, %p144
      %p146 = scmp.ne.s32.totalorder %s132, %s133
      %p147 = scmp.eq.s32.totalorder %s31, 1
      %p148 = por %p146, %p147
      %p150 = scmp.ne.s32.totalorder %s133, %s149
      %p151 = scmp.eq.s32.totalorder %s31, 0
      %p152 = por %p150, %p151
      %s153 = ssub.s32 %s25, %s32
      %p154 = scmp.eq.s32.totalorder %s153, 0
      %s156 = sadd.s32 %s155, 1
      %s157 = scalar_select %p154, %s155, %s156
      %p160 = pneg %p154
      %p161 = scmp.eq.s32.totalorder %s25, 1
      %p162 = por %p160, %p161
      %p163 = scmp.ne.s32.totalorder %s155, %s158
      %p164 = scmp.eq.s32.totalorder %s25, 0
      %p165 = por %p163, %p164
      %p166 = scmp.ne.s32.totalorder %s155, %s158
      %p167 = scmp.eq.s32.totalorder %s30, 1
      %p168 = por %p166, %p167
      %p169 = scmp.ne.s32.totalorder %s158, %s159
      %p170 = scmp.eq.s32.totalorder %s30, 0
      %p171 = por %p169, %p170
      %p172 = scmp.ne.s32.totalorder %s158, %s159
      %p173 = scmp.eq.s32.totalorder %s31, 1
      %p174 = por %p172, %p173
      %p176 = scmp.ne.s32.totalorder %s159, %s175
      %p177 = scmp.eq.s32.totalorder %s31, 0
      %p178 = por %p176, %p177
      %s179 = ssub.s32 %s25, %s32
      %p180 = scmp.eq.s32.totalorder %s179, 0
      %s182 = sadd.s32 %s181, 1
      %s183 = scalar_select %p180, %s181, %s182
      %p186 = pneg %p180
      %p187 = scmp.eq.s32.totalorder %s25, 1
      %p188 = por %p186, %p187
      %p189 = scmp.ne.s32.totalorder %s181, %s184
      %p190 = scmp.eq.s32.totalorder %s25, 0
      %p191 = por %p189, %p190
      %p192 = scmp.ne.s32.totalorder %s181, %s184
      %p193 = scmp.eq.s32.totalorder %s30, 1
      %p194 = por %p192, %p193
      %p195 = scmp.ne.s32.totalorder %s184, %s185
      %p196 = scmp.eq.s32.totalorder %s30, 0
      %p197 = por %p195, %p196
      %p198 = scmp.ne.s32.totalorder %s184, %s185
      %p199 = scmp.eq.s32.totalorder %s31, 1
      %p200 = por %p198, %p199
      %p202 = scmp.ne.s32.totalorder %s185, %s201
      %p203 = scmp.eq.s32.totalorder %s31, 0
      %p204 = por %p202, %p203
      %p205 = scmp.le.s32.totalorder 1, %s25
      %p206 = scmp.lt.s32.totalorder %s25, 3
      %p207 = pnand %p205, %p206
      %p208 = pneg %p207
      // Predicated region
      $region9: #{tpu_custom_call.1} parent=5 // pred_check
        _
      $region10: #{tpu_custom_call.1} parent=5 // pred_check_branch
        %210 = sbr.rel (%p207) target = $region12
      $region11: #{tpu_custom_call.1} parent=5 // pred_region
        %s211 = ssub.s32 %s25, 1
        // Predicated region
        $region13: #{tpu_custom_call.1} parent=11 // pred_check
          %p212 = pneg %p98
        $region14: #{tpu_custom_call.1} parent=11 // pred_check_branch
          %214 = sbr.rel (%p212) target = $region16
        $region15: #{tpu_custom_call.1} parent=11 // pred_region
          _
        $region16: #{tpu_custom_call.1} parent=11 // pred_fallthru
          _
        // Predicated region
        $region17: #{tpu_custom_call.1} parent=11 // pred_check
          %p215 = pneg %p119
        $region18: #{tpu_custom_call.1} parent=11 // pred_check_branch
          %217 = sbr.rel (%p215) target = $region20
        $region19: #{tpu_custom_call.1} parent=11 // pred_region
          _
        $region20: #{tpu_custom_call.1} parent=11 // pred_fallthru
          _
      $region12: #{tpu_custom_call.1} parent=5 // pred_fallthru
        _
      %p218 = scmp.lt.s32.totalorder %s25, 2
      // Predicated region
      $region21: #{tpu_custom_call.1} parent=5 // pred_check
        %p219 = pneg %p218
      $region22: #{tpu_custom_call.1} parent=5 // pred_check_branch
        %221 = sbr.rel (%p219) target = $region24
      $region23: #{tpu_custom_call.1} parent=5 // pred_region
        // Predicated region
        $region25: #{tpu_custom_call.1} parent=23 // pred_check
          %p222 = pneg %p45
        $region26: #{tpu_custom_call.1} parent=23 // pred_check_branch
          %224 = sbr.rel (%p222) target = $region28
        $region27: #{tpu_custom_call.1} parent=23 // pred_region
          %s225 = sand.u32 %s35, 1
          %s226 = scalar_lea.sflag [#allocation3], %s225
          %s227 = sand.u32 %s35, 1
          %s228 = smul.addr %s227, 128
          %s229 = scalar_lea.vmem [#allocation2], %s228
          %s230 = smul.u32 2, %s25
          %s232 = ssub.s32 2048, 2048
          %233 = vsyncadd %s226, %s232
          %s234 = smul.addr %s230, 8
          %s235 = smul.addr %s234, 128
          %s236 = scalar_lea.hbm %s0, %s235
          %s237 = sshll.u32 %s229, 4
          %s238 = int_to_ptr.vmem [resolvable:$true] %s237
          %243 = dma.hbm_to_vmem [thread:$0]  %s236, 2048, %s238, %s226, 256, 256, 16
        $region28: #{tpu_custom_call.1} parent=23 // pred_fallthru
          _
        // Predicated region
        $region29: #{tpu_custom_call.1} parent=23 // pred_check
          %p244 = pneg %p71
        $region30: #{tpu_custom_call.1} parent=23 // pred_check_branch
          %246 = sbr.rel (%p244) target = $region32
        $region31: #{tpu_custom_call.1} parent=23 // pred_region
          %s247 = sand.u32 %s61, 1
          %s248 = scalar_lea.sflag [#allocation6], %s247
          %s249 = sand.u32 %s61, 1
          %s250 = smul.addr %s249, 128
          %s251 = scalar_lea.vmem [#allocation5], %s250
          %s252 = smul.u32 2, %s25
          %s254 = ssub.s32 2048, 2048
          %255 = vsyncadd %s248, %s254
          %s256 = smul.addr %s252, 8
          %s257 = smul.addr %s256, 128
          %s258 = scalar_lea.hbm %s1, %s257
          %s259 = sshll.u32 %s251, 4
          %s260 = int_to_ptr.vmem [resolvable:$true] %s259
          %265 = dma.hbm_to_vmem [thread:$0]  %s258, 2048, %s260, %s248, 256, 256, 16
        $region32: #{tpu_custom_call.1} parent=23 // pred_fallthru
          _
      $region24: #{tpu_custom_call.1} parent=5 // pred_fallthru
        _
      %p266 = scmp.le.s32.totalorder 1, %s25
      %p267 = scmp.lt.s32.totalorder %s25, 3
      %p268 = pnand %p266, %p267
      %p269 = pneg %p268
      // Predicated region
      $region33: #{tpu_custom_call.1} parent=5 // pred_check
        _
      $region34: #{tpu_custom_call.1} parent=5 // pred_check_branch
        %271 = sbr.rel (%p268) target = $region36
      $region35: #{tpu_custom_call.1} parent=5 // pred_region
        %s272 = ssub.s32 %s25, 1
        %s273 = sand.u32 %s38, 1
        %s274 = scalar_lea.sflag [#allocation3], %s273
        %s275 = sand.u32 %s38, 1
        %s276 = smul.addr %s275, 128
        %s277 = scalar_lea.vmem [#allocation2], %s276
        // Predicated region
        $region37: #{tpu_custom_call.1} parent=35 // pred_check
          %p278 = pneg %p51
        $region38: #{tpu_custom_call.1} parent=35 // pred_check_branch
          %280 = sbr.rel (%p278) target = $region40
        $region39: #{tpu_custom_call.1} parent=35 // pred_region
          %281 = dma.done %s274, 2048
        $region40: #{tpu_custom_call.1} parent=35 // pred_fallthru
          _
        %s282 = sand.u32 %s64, 1
        %s283 = scalar_lea.sflag [#allocation6], %s282
        %s284 = sand.u32 %s64, 1
        %s285 = smul.addr %s284, 128
        %s286 = scalar_lea.vmem [#allocation5], %s285
        // Predicated region
        $region41: #{tpu_custom_call.1} parent=35 // pred_check
          %p287 = pneg %p77
        $region42: #{tpu_custom_call.1} parent=35 // pred_check_branch
          %289 = sbr.rel (%p287) target = $region44
        $region43: #{tpu_custom_call.1} parent=35 // pred_region
          %290 = dma.done %s283, 2048
        $region44: #{tpu_custom_call.1} parent=35 // pred_fallthru
          _
        %s291 = sand.u32 %s38, 1
        %s292 = scalar_lea.sflag [#allocation3], %s291
        %s293 = sand.u32 %s38, 1
        %s294 = smul.addr %s293, 128
        %s295 = scalar_lea.vmem [#allocation2], %s294
        %p296 = pneg %p51
        %p297 = pneg %p48
        %s298 = sand.u32 %s64, 1
        %s299 = scalar_lea.sflag [#allocation6], %s298
        %s300 = sand.u32 %s64, 1
        %s301 = smul.addr %s300, 128
        %s302 = scalar_lea.vmem [#allocation5], %s301
        %p303 = pneg %p77
        %p304 = pneg %p74
        %p305 = pneg %p98
        %p306 = pneg %p95
        %p307 = pneg %p119
        %p308 = pneg %p116
        %p309 = pneg %p145
        %p310 = pneg %p142
        %s311 = sand.u32 %s132, 1
        %s312 = scalar_lea.sflag [#allocation4], %s311
        %s313 = sand.u32 %s132, 1
        %s314 = smul.addr %s313, 128
        %s315 = scalar_lea.vmem [#allocation7], %s314
        %p316 = pneg %p171
        %p317 = pneg %p168
        %s318 = sand.u32 %s30, 1
        %s319 = scalar_lea.sflag [#allocation9], %s318
        %s320 = sand.u32 %s158, 1
        %s321 = smul.addr %s320, 128
        %s322 = scalar_lea.vmem [#allocation8], %s321
        %p323 = pneg %p197
        %p324 = pneg %p194
        %s325 = sand.u32 %s30, 1
        %s326 = scalar_lea.sflag [#allocation9], %s325
        %s327 = sand.u32 %s184, 1
        %s328 = smul.addr %s327, 128
        %s329 = scalar_lea.vmem [#allocation10], %s328
        %s330 = smul.u32 2, %s30
        %s331 = smul.u32 2, %s30
        %s332 = smul.u32 2, %s30
        %s333 = smul.u32 2, %s30
        %s334 = smul.u32 2, %s30
        %v335 = vld [vmem:[%s277] sm:$0xff]
        %v336 = vld [vmem:[%s277 + $0x8] sm:$0xff]
        %v337 = vld [vmem:[%s277 + $0x10] sm:$0xff]
        %v338 = vld [vmem:[%s277 + $0x18] sm:$0xff]
        %v339 = vld [vmem:[%s277 + $0x20] sm:$0xff]
        %v340 = vld [vmem:[%s277 + $0x28] sm:$0xff]
        %v341 = vld [vmem:[%s277 + $0x30] sm:$0xff]
        %v342 = vld [vmem:[%s277 + $0x38] sm:$0xff]
        %v343 = vld [vmem:[%s277 + $0x40] sm:$0xff]
        %v344 = vld [vmem:[%s277 + $0x48] sm:$0xff]
        %v345 = vld [vmem:[%s277 + $0x50] sm:$0xff]
        %v346 = vld [vmem:[%s277 + $0x58] sm:$0xff]
        %v347 = vld [vmem:[%s277 + $0x60] sm:$0xff]
        %v348 = vld [vmem:[%s277 + $0x68] sm:$0xff]
        %v349 = vld [vmem:[%s277 + $0x70] sm:$0xff]
        %v350 = vld [vmem:[%s277 + $0x78] sm:$0xff]
        %v351 = vld [vmem:[%s286] sm:$0xff]
        %v352 = vld [vmem:[%s286 + $0x8] sm:$0xff]
        %v353 = vld [vmem:[%s286 + $0x10] sm:$0xff]
        %v354 = vld [vmem:[%s286 + $0x18] sm:$0xff]
        %v355 = vld [vmem:[%s286 + $0x20] sm:$0xff]
        %v356 = vld [vmem:[%s286 + $0x28] sm:$0xff]
        %v357 = vld [vmem:[%s286 + $0x30] sm:$0xff]
        %v358 = vld [vmem:[%s286 + $0x38] sm:$0xff]
        %v359 = vld [vmem:[%s286 + $0x40] sm:$0xff]
        %v360 = vld [vmem:[%s286 + $0x48] sm:$0xff]
        %v361 = vld [vmem:[%s286 + $0x50] sm:$0xff]
        %v362 = vld [vmem:[%s286 + $0x58] sm:$0xff]
        %v363 = vld [vmem:[%s286 + $0x60] sm:$0xff]
        %v364 = vld [vmem:[%s286 + $0x68] sm:$0xff]
        %v365 = vld [vmem:[%s286 + $0x70] sm:$0xff]
        %v366 = vld [vmem:[%s286 + $0x78] sm:$0xff]
        %v367 = vsub.f32 %v351, %v335
        %v368 = vsub.f32 %v352, %v336
        %v369 = vsub.f32 %v353, %v337
        %v370 = vsub.f32 %v354, %v338
        %v371 = vsub.f32 %v355, %v339
        %v372 = vsub.f32 %v356, %v340
        %v373 = vsub.f32 %v357, %v341
        %v374 = vsub.f32 %v358, %v342
        %v375 = vsub.f32 %v359, %v343
        %v376 = vsub.f32 %v360, %v344
        %v377 = vsub.f32 %v361, %v345
        %v378 = vsub.f32 %v362, %v346
        %v379 = vsub.f32 %v363, %v347
        %v380 = vsub.f32 %v364, %v348
        %v381 = vsub.f32 %v365, %v349
        %v382 = vsub.f32 %v366, %v350
        %v383 = vadd.f32 %v367, %v368
        %384 = vadd.xlane.f32.xlu0 %v383
        %v385 = vpop.xlane.xlu0 %384
        %v386 = vadd.f32 %v369, %v370
        %387 = vadd.xlane.f32.xlu0 %v386
        %v388 = vpop.xlane.xlu0 %387
        %v389 = vadd.f32 %v371, %v372
        %390 = vadd.xlane.f32.xlu0 %v389
        %v391 = vpop.xlane.xlu0 %390
        %v392 = vadd.f32 %v373, %v374
        %393 = vadd.xlane.f32.xlu0 %v392
        %v394 = vpop.xlane.xlu0 %393
        %v395 = vadd.f32 %v375, %v376
        %396 = vadd.xlane.f32.xlu0 %v395
        %v397 = vpop.xlane.xlu0 %396
        %v398 = vadd.f32 %v377, %v378
        %399 = vadd.xlane.f32.xlu0 %v398
        %v400 = vpop.xlane.xlu0 %399
        %v401 = vadd.f32 %v379, %v380
        %402 = vadd.xlane.f32.xlu0 %v401
        %v403 = vpop.xlane.xlu0 %402
        %v404 = vadd.f32 %v381, %v382
        %405 = vadd.xlane.f32.xlu0 %v404
        %v406 = vpop.xlane.xlu0 %405
        %v407 = vmul.f32 %v385, 0.00390625
        %v408 = vmul.f32 %v388, 0.00390625
        %v409 = vmul.f32 %v391, 0.00390625
        %v410 = vmul.f32 %v394, 0.00390625
        %v411 = vmul.f32 %v397, 0.00390625
        %v412 = vmul.f32 %v400, 0.00390625
        %v413 = vmul.f32 %v403, 0.00390625
        %v414 = vmul.f32 %v406, 0.00390625
        %v415 = vmax.f32 %v367, %v368
        %416 = vmax.xlane.f32.xlu0 %v415
        %v417 = vpop.xlane.xlu0 %416
        %v418 = vmax.f32 %v369, %v370
        %419 = vmax.xlane.f32.xlu0 %v418
        %v420 = vpop.xlane.xlu0 %419
        %v421 = vmax.f32 %v371, %v372
        %422 = vmax.xlane.f32.xlu0 %v421
        %v423 = vpop.xlane.xlu0 %422
        %v424 = vmax.f32 %v373, %v374
        %425 = vmax.xlane.f32.xlu0 %v424
        %v426 = vpop.xlane.xlu0 %425
        %v427 = vmax.f32 %v375, %v376
        %428 = vmax.xlane.f32.xlu0 %v427
        %v429 = vpop.xlane.xlu0 %428
        %v430 = vmax.f32 %v377, %v378
        %431 = vmax.xlane.f32.xlu0 %v430
        %v432 = vpop.xlane.xlu0 %431
        %v433 = vmax.f32 %v379, %v380
        %434 = vmax.xlane.f32.xlu0 %v433
        %v435 = vpop.xlane.xlu0 %434
        %v436 = vmax.f32 %v381, %v382
        %437 = vmax.xlane.f32.xlu0 %v436
        %v438 = vpop.xlane.xlu0 %437
        %v447 = vlaneseq
        %v448 = vand.u32 %v447, 127
        %v449 = vlaneseq
        %v450 = vshrl.u32 %v449, 7
        %v451 = vsub.s32 %v448, %v450
        %v452 = vrot.slane %v407, %v451
        %v453 = vadd.s32 %v448, 4294967288
        %v454 = vlaneseq
        %v455 = vshrl.u32 %v454, 7
        %v456 = vsub.s32 %v453, %v455
        %v457 = vrot.slane %v408, %v456
        %vm458 = vcmask 130112
        %v459 = vsel %vm458, %v457, %v452
        %v460 = vadd.s32 %v448, 4294967280
        %v461 = vlaneseq
        %v462 = vshrl.u32 %v461, 7
        %v463 = vsub.s32 %v460, %v462
        %v464 = vrot.slane %v409, %v463
        %vm465 = vcmask 195712
        %v466 = vsel %vm465, %v464, %v459
        %v467 = vadd.s32 %v448, 4294967272
        %v468 = vlaneseq
        %v469 = vshrl.u32 %v468, 7
        %v470 = vsub.s32 %v467, %v469
        %v471 = vrot.slane %v410, %v470
        %vm472 = vcmask 261312
        %v473 = vsel %vm472, %v471, %v466
        %v474 = vlaneseq
        %v475 = vshrl.u32 %v474, 7
        %v476 = vsub.s32 %v448, %v475
        %v477 = vrot.slane %v411, %v476
        %v478 = vlaneseq
        %v479 = vshrl.u32 %v478, 7
        %v480 = vsub.s32 %v453, %v479
        %v481 = vrot.slane %v412, %v480
        %v482 = vsel %vm458, %v481, %v477
        %v483 = vlaneseq
        %v484 = vshrl.u32 %v483, 7
        %v485 = vsub.s32 %v460, %v484
        %v486 = vrot.slane %v413, %v485
        %v487 = vsel %vm465, %v486, %v482
        %v488 = vlaneseq
        %v489 = vshrl.u32 %v488, 7
        %v490 = vsub.s32 %v467, %v489
        %v491 = vrot.slane %v414, %v490
        %v492 = vsel %vm472, %v491, %v487
        %vm493 = vcmask 1041409
        %v494 = vsel %vm493, %v492, %v473
        %v504 = vlaneseq
        %v505 = vshrl.u32 %v504, 7
        %v506 = vsub.s32 %v448, %v505
        %v507 = vrot.slane %v417, %v506
        %v508 = vlaneseq
        %v509 = vshrl.u32 %v508, 7
        %v510 = vsub.s32 %v453, %v509
        %v511 = vrot.slane %v420, %v510
        %v512 = vsel %vm458, %v511, %v507
        %v513 = vlaneseq
        %v514 = vshrl.u32 %v513, 7
        %v515 = vsub.s32 %v460, %v514
        %v516 = vrot.slane %v423, %v515
        %v517 = vsel %vm465, %v516, %v512
        %v518 = vlaneseq
        %v519 = vshrl.u32 %v518, 7
        %v520 = vsub.s32 %v467, %v519
        %v521 = vrot.slane %v426, %v520
        %v522 = vsel %vm472, %v521, %v517
        %v523 = vlaneseq
        %v524 = vshrl.u32 %v523, 7
        %v525 = vsub.s32 %v448, %v524
        %v526 = vrot.slane %v429, %v525
        %v527 = vlaneseq
        %v528 = vshrl.u32 %v527, 7
        %v529 = vsub.s32 %v453, %v528
        %v530 = vrot.slane %v432, %v529
        %v531 = vsel %vm458, %v530, %v526
        %v532 = vlaneseq
        %v533 = vshrl.u32 %v532, 7
        %v534 = vsub.s32 %v460, %v533
        %v535 = vrot.slane %v435, %v534
        %v536 = vsel %vm465, %v535, %v531
        %v537 = vlaneseq
        %v538 = vshrl.u32 %v537, 7
        %v539 = vsub.s32 %v467, %v538
        %v540 = vrot.slane %v438, %v539
        %v541 = vsel %vm472, %v540, %v536
        %vm542 = vcmask 1043459
        %v543 = vsel %vm542, %v541, %v522
        %vm545 = vcmask 1041408
        %v546 = vsel %vm545, %v494, %v543
        %v547 = vld [vmem:[%s2] sm:$0xff]
        %v548 = vld [vmem:[%s2 + $0x8] sm:$0xff]
        %v549 = vld [vmem:[%s2 + $0x10] sm:$0xff]
        %v550 = vld [vmem:[%s2 + $0x18] sm:$0xff]
        %vm551 = vcmask 261120
        %v553 = vsel %vm551, %v546, 0
        %555 = vmatprep.subr.mxu0 0.0
        %556 = vmatpush1.msra.mxu0 %v547
        %557 = vmatprep.subr.mxu0 0.0
        %558 = vmatpush1.msra.mxu0 %v548
        %559 = vmatprep.subr.mxu0 0.0
        %560 = vmatpush1.msra.mxu0 %v549
        %561 = vmatprep.subr.mxu0 0.0
        %562 = vmatpush1.msra.mxu0 %v550
        %563 = vmatprep.subr.mxu0 0.0
        %564 = vmatpush1.msra.mxu0 0.0
        %565 = vmatprep.subr.mxu0 0.0
        %566 = vmatpush1.msra.mxu0 0.0
        %567 = vmatprep.subr.mxu0 0.0
        %568 = vmatpush1.msra.mxu0 0.0
        %569 = vmatprep.subr.mxu0 0.0
        %570 = vmatpush1.msra.mxu0 0.0
        %571 = vmatprep.subr.mxu0 0.0
        %572 = vmatpush1.msra.mxu0 0.0
        %573 = vmatprep.subr.mxu0 0.0
        %574 = vmatpush1.msra.mxu0 0.0
        %575 = vmatprep.subr.mxu0 0.0
        %576 = vmatpush1.msra.mxu0 0.0
        %577 = vmatprep.subr.mxu0 0.0
        %578 = vmatpush1.msra.mxu0 0.0
        %579 = vmatprep.subr.mxu0 0.0
        %580 = vmatpush1.msra.mxu0 0.0
        %581 = vmatprep.subr.mxu0 0.0
        %582 = vmatpush1.msra.mxu0 0.0
        %583 = vmatprep.subr.mxu0 0.0
        %584 = vmatpush1.msra.mxu0 0.0
        %585 = vmatprep.subr.mxu0 0.0
        %586 = vmatpush1.msra.mxu0 0.0
        %587 = vmatprep.subr.mxu0 0.0
        %588 = vmatpush1.msra.mxu0 0.0
        %589 = vmatprep.subr.mxu0 0.0
        %590 = vmatpush1.msra.mxu0 0.0
        %591 = vmatprep.subr.mxu0 0.0
        %592 = vmatpush1.msra.mxu0 0.0
        %593 = vmatprep.subr.mxu0 0.0
        %594 = vmatpush1.msra.mxu0 0.0
        %595 = vmatprep.subr.mxu0 0.0
        %596 = vmatpush1.msra.mxu0 0.0
        %597 = vmatprep.subr.mxu0 0.0
        %598 = vmatpush1.msra.mxu0 0.0
        %599 = vmatprep.subr.mxu0 0.0
        %600 = vmatpush1.msra.mxu0 0.0
        %601 = vmatprep.subr.mxu0 0.0
        %602 = vmatpush1.msra.mxu0 0.0
        %603 = vmatprep.subr.mxu0 0.0
        %604 = vmatpush1.msra.mxu0 0.0
        %605 = vmatprep.subr.mxu0 0.0
        %606 = vmatpush1.msra.mxu0 0.0
        %607 = vmatprep.subr.mxu0 0.0
        %608 = vmatpush1.msra.mxu0 0.0
        %609 = vmatprep.subr.mxu0 0.0
        %610 = vmatpush1.msra.mxu0 0.0
        %611 = vmatprep.subr.mxu0 0.0
        %612 = vmatpush1.msra.mxu0 0.0
        %613 = vmatprep.subr.mxu0 0.0
        %614 = vmatpush1.msra.mxu0 0.0
        %615 = vmatprep.subr.mxu0 0.0
        %616 = vmatpush1.msra.mxu0 0.0
        %617 = vmatprep.subr.mxu0 0.0
        %618 = vmatpush1.msra.mxu0 0.0
        %619 = vmatprep.mubr.f32.mxu0 0.0
        %620 = vmatmul.mubr.f32.gmra.mrb[0].mxu0 %v553
        %v621 = vpop.f32.mrb[0].mxu0
        %v622 = vadd.f32 0.0, %v621
        %v623 = vpop.f32.mrb[0].mxu0
        %624 = vdwg.mxu0
        %v625 = vmax.f32 %v622, 0.0
        %v627 = vrot.slane %v625, 2
        %v629 = vadd.f32 %v625, %v627
        %v630 = vld [vmem:[%s3] sm:$0x3]
        %vm631 = vcmask 15360
        %v633 = vsel %vm631, %v629, 0
        %v636 = vsel %vm545, %v630, 0
        %638 = vmatprep.subr.mxu0 0.0
        %639 = vmatpush1.msra.mxu0 %v636
        %640 = vmatprep.subr.mxu0 0.0
        %641 = vmatpush1.msra.mxu0 0.0
        %642 = vmatprep.subr.mxu0 0.0
        %643 = vmatpush1.msra.mxu0 0.0
        %644 = vmatprep.subr.mxu0 0.0
        %645 = vmatpush1.msra.mxu0 0.0
        %646 = vmatprep.subr.mxu0 0.0
        %647 = vmatpush1.msra.mxu0 0.0
        %648 = vmatprep.subr.mxu0 0.0
        %649 = vmatpush1.msra.mxu0 0.0
        %650 = vmatprep.subr.mxu0 0.0
        %651 = vmatpush1.msra.mxu0 0.0
        %652 = vmatprep.subr.mxu0 0.0
        %653 = vmatpush1.msra.mxu0 0.0
        %654 = vmatprep.subr.mxu0 0.0
        %655 = vmatpush1.msra.mxu0 0.0
        %656 = vmatprep.subr.mxu0 0.0
        %657 = vmatpush1.msra.mxu0 0.0
        %658 = vmatprep.subr.mxu0 0.0
        %659 = vmatpush1.msra.mxu0 0.0
        %660 = vmatprep.subr.mxu0 0.0
        %661 = vmatpush1.msra.mxu0 0.0
        %662 = vmatprep.subr.mxu0 0.0
        %663 = vmatpush1.msra.mxu0 0.0
        %664 = vmatprep.subr.mxu0 0.0
        %665 = vmatpush1.msra.mxu0 0.0
        %666 = vmatprep.subr.mxu0 0.0
        %667 = vmatpush1.msra.mxu0 0.0
        %668 = vmatprep.subr.mxu0 0.0
        %669 = vmatpush1.msra.mxu0 0.0
        %670 = vmatprep.subr.mxu0 0.0
        %671 = vmatpush1.msra.mxu0 0.0
        %672 = vmatprep.subr.mxu0 0.0
        %673 = vmatpush1.msra.mxu0 0.0
        %674 = vmatprep.subr.mxu0 0.0
        %675 = vmatpush1.msra.mxu0 0.0
        %676 = vmatprep.subr.mxu0 0.0
        %677 = vmatpush1.msra.mxu0 0.0
        %678 = vmatprep.subr.mxu0 0.0
        %679 = vmatpush1.msra.mxu0 0.0
        %680 = vmatprep.subr.mxu0 0.0
        %681 = vmatpush1.msra.mxu0 0.0
        %682 = vmatprep.subr.mxu0 0.0
        %683 = vmatpush1.msra.mxu0 0.0
        %684 = vmatprep.subr.mxu0 0.0
        %685 = vmatpush1.msra.mxu0 0.0
        %686 = vmatprep.subr.mxu0 0.0
        %687 = vmatpush1.msra.mxu0 0.0
        %688 = vmatprep.subr.mxu0 0.0
        %689 = vmatpush1.msra.mxu0 0.0
        %690 = vmatprep.subr.mxu0 0.0
        %691 = vmatpush1.msra.mxu0 0.0
        %692 = vmatprep.subr.mxu0 0.0
        %693 = vmatpush1.msra.mxu0 0.0
        %694 = vmatprep.subr.mxu0 0.0
        %695 = vmatpush1.msra.mxu0 0.0
        %696 = vmatprep.subr.mxu0 0.0
        %697 = vmatpush1.msra.mxu0 0.0
        %698 = vmatprep.subr.mxu0 0.0
        %699 = vmatpush1.msra.mxu0 0.0
        %700 = vmatprep.subr.mxu0 0.0
        %701 = vmatpush1.msra.mxu0 0.0
        %702 = vmatprep.mubr.f32.mxu0 0.0
        %703 = vmatmul.mubr.f32.gmra.mrb[0].mxu0 %v633
        %v704 = vpop.f32.mrb[0].mxu0
        %v705 = vadd.f32 0.0, %v704
        %v706 = vpop.f32.mrb[0].mxu0
        %707 = vdwg.mxu0
        %v708 = vsub.f32 0.0, %v705
        %v709 = vmul.f32 %v708, 1.442695
        %v710 = vpow.pop %v709
        %v711 = vadd.f32 %v710, 1.0
        %v712 = vrcp.pop %v711
        %v713 = vmul.f32 1.0, %v712
        %v714 = vadd.f32 %v713, 1.0
        %v715 = vlaneseq
        %v716 = vshrl.u32 %v715, 7
        %v717 = vsub.s32 0, %v716
        %v718 = vrot.slane %v714, %v717
        %720 = vbcast.lane.b32.xlu0 %v718, 256
        %v721 = vpop.permute.xlu0 %720
        %s723 = sor.u32 256, 8
        %724 = vbcast.lane.b32.xlu0 %v718, %s723
        %v725 = vpop.permute.xlu0 %724
        %s727 = sor.u32 256, 16
        %728 = vbcast.lane.b32.xlu0 %v718, %s727
        %v729 = vpop.permute.xlu0 %728
        %s731 = sor.u32 256, 24
        %732 = vbcast.lane.b32.xlu0 %v718, %s731
        %v733 = vpop.permute.xlu0 %732
        %v734 = vlaneseq
        %v735 = vshrl.u32 %v734, 7
        %v736 = vsub.s32 1, %v735
        %v737 = vrot.slane %v714, %v736
        %739 = vbcast.lane.b32.xlu0 %v737, 256
        %v740 = vpop.permute.xlu0 %739
        %s742 = sor.u32 256, 8
        %743 = vbcast.lane.b32.xlu0 %v737, %s742
        %v744 = vpop.permute.xlu0 %743
        %s746 = sor.u32 256, 16
        %747 = vbcast.lane.b32.xlu0 %v737, %s746
        %v748 = vpop.permute.xlu0 %747
        %s750 = sor.u32 256, 24
        %751 = vbcast.lane.b32.xlu0 %v737, %s750
        %v752 = vpop.permute.xlu0 %751
        %v753 = vmul.f32 %v335, %v721
        %v754 = vmul.f32 %v336, %v721
        %v755 = vmul.f32 %v337, %v725
        %v756 = vmul.f32 %v338, %v725
        %v757 = vmul.f32 %v339, %v729
        %v758 = vmul.f32 %v340, %v729
        %v759 = vmul.f32 %v341, %v733
        %v760 = vmul.f32 %v342, %v733
        %v761 = vmul.f32 %v343, %v740
        %v762 = vmul.f32 %v344, %v740
        %v763 = vmul.f32 %v345, %v744
        %v764 = vmul.f32 %v346, %v744
        %v765 = vmul.f32 %v347, %v748
        %v766 = vmul.f32 %v348, %v748
        %v767 = vmul.f32 %v349, %v752
        %v768 = vmul.f32 %v350, %v752
        %769 = vst [vmem:[%s315] sm:$0xff] %v753
        %770 = vst [vmem:[%s315 + $0x8] sm:$0xff] %v754
        %771 = vst [vmem:[%s315 + $0x10] sm:$0xff] %v755
        %772 = vst [vmem:[%s315 + $0x18] sm:$0xff] %v756
        %773 = vst [vmem:[%s315 + $0x20] sm:$0xff] %v757
        %774 = vst [vmem:[%s315 + $0x28] sm:$0xff] %v758
        %775 = vst [vmem:[%s315 + $0x30] sm:$0xff] %v759
        %776 = vst [vmem:[%s315 + $0x38] sm:$0xff] %v760
        %777 = vst [vmem:[%s315 + $0x40] sm:$0xff] %v761
        %778 = vst [vmem:[%s315 + $0x48] sm:$0xff] %v762
        %779 = vst [vmem:[%s315 + $0x50] sm:$0xff] %v763
        %780 = vst [vmem:[%s315 + $0x58] sm:$0xff] %v764
        %781 = vst [vmem:[%s315 + $0x60] sm:$0xff] %v765
        %782 = vst [vmem:[%s315 + $0x68] sm:$0xff] %v766
        %783 = vst [vmem:[%s315 + $0x70] sm:$0xff] %v767
        %784 = vst [vmem:[%s315 + $0x78] sm:$0xff] %v768
        %v785 = vmul.f32 %v351, %v721
        %v786 = vmul.f32 %v352, %v721
        %v787 = vmul.f32 %v353, %v725
        %v788 = vmul.f32 %v354, %v725
        %v789 = vmul.f32 %v355, %v729
        %v790 = vmul.f32 %v356, %v729
        %v791 = vmul.f32 %v357, %v733
        %v792 = vmul.f32 %v358, %v733
        %v793 = vmul.f32 %v359, %v740
        %v794 = vmul.f32 %v360, %v740
        %v795 = vmul.f32 %v361, %v744
        %v796 = vmul.f32 %v362, %v744
        %v797 = vmul.f32 %v363, %v748
        %v798 = vmul.f32 %v364, %v748
        %v799 = vmul.f32 %v365, %v752
        %v800 = vmul.f32 %v366, %v752
        %801 = vst [vmem:[%s322] sm:$0xff] %v785
        %802 = vst [vmem:[%s322 + $0x8] sm:$0xff] %v786
        %803 = vst [vmem:[%s322 + $0x10] sm:$0xff] %v787
        %804 = vst [vmem:[%s322 + $0x18] sm:$0xff] %v788
        %805 = vst [vmem:[%s322 + $0x20] sm:$0xff] %v789
        %806 = vst [vmem:[%s322 + $0x28] sm:$0xff] %v790
        %807 = vst [vmem:[%s322 + $0x30] sm:$0xff] %v791
        %808 = vst [vmem:[%s322 + $0x38] sm:$0xff] %v792
        %809 = vst [vmem:[%s322 + $0x40] sm:$0xff] %v793
        %810 = vst [vmem:[%s322 + $0x48] sm:$0xff] %v794
        %811 = vst [vmem:[%s322 + $0x50] sm:$0xff] %v795
        %812 = vst [vmem:[%s322 + $0x58] sm:$0xff] %v796
        %813 = vst [vmem:[%s322 + $0x60] sm:$0xff] %v797
        %814 = vst [vmem:[%s322 + $0x68] sm:$0xff] %v798
        %815 = vst [vmem:[%s322 + $0x70] sm:$0xff] %v799
        %816 = vst [vmem:[%s322 + $0x78] sm:$0xff] %v800
        %v817 = vmul.f32 %v367, %v721
        %v818 = vmul.f32 %v368, %v721
        %v819 = vmul.f32 %v369, %v725
        %v820 = vmul.f32 %v370, %v725
        %v821 = vmul.f32 %v371, %v729
        %v822 = vmul.f32 %v372, %v729
        %v823 = vmul.f32 %v373, %v733
        %v824 = vmul.f32 %v374, %v733
        %v825 = vmul.f32 %v375, %v740
        %v826 = vmul.f32 %v376, %v740
        %v827 = vmul.f32 %v377, %v744
        %v828 = vmul.f32 %v378, %v744
        %v829 = vmul.f32 %v379, %v748
        %v830 = vmul.f32 %v380, %v748
        %v831 = vmul.f32 %v381, %v752
        %v832 = vmul.f32 %v382, %v752
        %833 = vst [vmem:[%s329] sm:$0xff] %v817
        %834 = vst [vmem:[%s329 + $0x8] sm:$0xff] %v818
        %835 = vst [vmem:[%s329 + $0x10] sm:$0xff] %v819
        %836 = vst [vmem:[%s329 + $0x18] sm:$0xff] %v820
        %837 = vst [vmem:[%s329 + $0x20] sm:$0xff] %v821
        %838 = vst [vmem:[%s329 + $0x28] sm:$0xff] %v822
        %839 = vst [vmem:[%s329 + $0x30] sm:$0xff] %v823
        %840 = vst [vmem:[%s329 + $0x38] sm:$0xff] %v824
        %841 = vst [vmem:[%s329 + $0x40] sm:$0xff] %v825
        %842 = vst [vmem:[%s329 + $0x48] sm:$0xff] %v826
        %843 = vst [vmem:[%s329 + $0x50] sm:$0xff] %v827
        %844 = vst [vmem:[%s329 + $0x58] sm:$0xff] %v828
        %845 = vst [vmem:[%s329 + $0x60] sm:$0xff] %v829
        %846 = vst [vmem:[%s329 + $0x68] sm:$0xff] %v830
        %847 = vst [vmem:[%s329 + $0x70] sm:$0xff] %v831
        %848 = vst [vmem:[%s329 + $0x78] sm:$0xff] %v832
        %s849 = sand.u32 %s132, 1
        %s850 = scalar_lea.sflag [#allocation4], %s849
        %s851 = sand.u32 %s132, 1
        %s852 = smul.addr %s851, 128
        %s853 = scalar_lea.vmem [#allocation7], %s852
        %s854 = sand.u32 %s30, 1
        %s855 = scalar_lea.sflag [#allocation9], %s854
        %s856 = sand.u32 %s158, 1
        %s857 = smul.addr %s856, 128
        %s858 = scalar_lea.vmem [#allocation8], %s857
        %s859 = sand.u32 %s30, 1
        %s860 = scalar_lea.sflag [#allocation9], %s859
        %s861 = sand.u32 %s184, 1
        %s862 = smul.addr %s861, 128
        %s863 = scalar_lea.vmem [#allocation10], %s862
        // Predicated region
        $region45: #{tpu_custom_call.1} parent=35 // pred_check
          %p864 = pneg %p142
        $region46: #{tpu_custom_call.1} parent=35 // pred_check_branch
          %866 = sbr.rel (%p864) target = $region48
        $region47: #{tpu_custom_call.1} parent=35 // pred_region
          %s867 = smul.u32 2, %s30
          %s869 = ssub.s32 2048, 2048
          %870 = vsyncadd %s850, %s869
          %s871 = smul.addr %s867, 8
          %s872 = smul.addr %s871, 128
          %s873 = scalar_lea.hbm %s4, %s872
          %s874 = sshll.u32 %s853, 4
          %s875 = int_to_ptr.vmem [resolvable:$true] %s874
          %880 = dma.vmem_to_hbm [thread:$0]  %s875, 2048, %s873, %s850, 256, 256, 16
        $region48: #{tpu_custom_call.1} parent=35 // pred_fallthru
          _
        // Predicated region
        $region49: #{tpu_custom_call.1} parent=35 // pred_check
          %p881 = pneg %p168
        $region50: #{tpu_custom_call.1} parent=35 // pred_check_branch
          %883 = sbr.rel (%p881) target = $region52
        $region51: #{tpu_custom_call.1} parent=35 // pred_region
          %s884 = smul.u32 2, %s30
          %s886 = ssub.s32 2048, 2048
          %887 = vsyncadd %s855, %s886
          %s888 = smul.addr %s884, 8
          %s889 = smul.addr %s888, 128
          %s890 = scalar_lea.hbm %s5, %s889
          %s891 = sshll.u32 %s858, 4
          %s892 = int_to_ptr.vmem [resolvable:$true] %s891
          %897 = dma.vmem_to_hbm [thread:$0]  %s892, 2048, %s890, %s855, 256, 256, 16
        $region52: #{tpu_custom_call.1} parent=35 // pred_fallthru
          _
        // Predicated region
        $region53: #{tpu_custom_call.1} parent=35 // pred_check
          %p898 = pneg %p194
        $region54: #{tpu_custom_call.1} parent=35 // pred_check_branch
          %900 = sbr.rel (%p898) target = $region56
        $region55: #{tpu_custom_call.1} parent=35 // pred_region
          %s901 = smul.u32 2, %s30
          %s903 = ssub.s32 2048, 2048
          %904 = vsyncadd %s860, %s903
          %s905 = smul.addr %s901, 8
          %s906 = smul.addr %s905, 128
          %s907 = scalar_lea.hbm %s6, %s906
          %s908 = sshll.u32 %s863, 4
          %s909 = int_to_ptr.vmem [resolvable:$true] %s908
          %914 = dma.vmem_to_hbm [thread:$0]  %s909, 2048, %s907, %s860, 256, 256, 16
        $region56: #{tpu_custom_call.1} parent=35 // pred_fallthru
          _
      $region36: #{tpu_custom_call.1} parent=5 // pred_fallthru
        _
      %p915 = scmp.le.s32.totalorder 2, %s25
      // Predicated region
      $region57: #{tpu_custom_call.1} parent=5 // pred_check
        %p916 = pneg %p915
      $region58: #{tpu_custom_call.1} parent=5 // pred_check_branch
        %918 = sbr.rel (%p916) target = $region60
      $region59: #{tpu_custom_call.1} parent=5 // pred_region
        %s919 = ssub.s32 %s25, 2
        // Predicated region
        $region61: #{tpu_custom_call.1} parent=59 // pred_check
          %p920 = pneg %p148
        $region62: #{tpu_custom_call.1} parent=59 // pred_check_branch
          %922 = sbr.rel (%p920) target = $region64
        $region63: #{tpu_custom_call.1} parent=59 // pred_region
          %s923 = sand.u32 %s133, 1
          %s924 = scalar_lea.sflag [#allocation4], %s923
          %s925 = sand.u32 %s133, 1
          %s926 = smul.addr %s925, 128
          %s927 = scalar_lea.vmem [#allocation7], %s926
          %928 = dma.done %s924, 2048
        $region64: #{tpu_custom_call.1} parent=59 // pred_fallthru
          _
        // Predicated region
        $region65: #{tpu_custom_call.1} parent=59 // pred_check
          %p929 = pneg %p174
        $region66: #{tpu_custom_call.1} parent=59 // pred_check_branch
          %931 = sbr.rel (%p929) target = $region68
        $region67: #{tpu_custom_call.1} parent=59 // pred_region
          %s932 = sand.u32 %s31, 1
          %s933 = scalar_lea.sflag [#allocation9], %s932
          %s934 = sand.u32 %s159, 1
          %s935 = smul.addr %s934, 128
          %s936 = scalar_lea.vmem [#allocation8], %s935
          %937 = dma.done %s933, 2048
        $region68: #{tpu_custom_call.1} parent=59 // pred_fallthru
          _
        // Predicated region
        $region69: #{tpu_custom_call.1} parent=59 // pred_check
          %p938 = pneg %p200
        $region70: #{tpu_custom_call.1} parent=59 // pred_check_branch
          %940 = sbr.rel (%p938) target = $region72
        $region71: #{tpu_custom_call.1} parent=59 // pred_region
          %s941 = sand.u32 %s31, 1
          %s942 = scalar_lea.sflag [#allocation9], %s941
          %s943 = sand.u32 %s185, 1
          %s944 = smul.addr %s943, 128
          %s945 = scalar_lea.vmem [#allocation10], %s944
          %946 = dma.done %s942, 2048
        $region72: #{tpu_custom_call.1} parent=59 // pred_fallthru
          _
      $region60: #{tpu_custom_call.1} parent=5 // pred_fallthru
        _
    $region6: #{tpu_custom_call.1} parent=1 // loop_footer
      %s29 = sadd.s32 1, %s25
    $region7: #{tpu_custom_call.1} parent=1 // loop_footer_branch
      %24 = sbr.rel target = $region3
    $region8: #{tpu_custom_call.1} parent=1 // loop_exit
      _
    %947 = vsyncpa [#allocation3], 1
    %s948 = scalar_lea.sflag [#allocation3], 1
    %949 = vsyncpa %s948, 1
    %950 = vsyncpa [#allocation6], 1
    %s951 = scalar_lea.sflag [#allocation6], 1
    %952 = vsyncpa %s951, 1
    %953 = vsyncpa [#allocation4], 1
    %s954 = scalar_lea.sflag [#allocation4], 1
    %955 = vsyncpa %s954, 1
    %956 = vsyncpa [#allocation9], 1
    %s957 = scalar_lea.sflag [#allocation9], 1
    %958 = vsyncpa %s957, 1

</llo_original>
